<compile_context>
chip_gen: v5e
topology: v5e:2x2
jax: 0.10.0
libtpu: 0.0.40
codegen_flags: <defaults>
</compile_context>

<pallas_src>
import functools

import numpy as np
import jax
import jax.numpy as jnp
from jax import lax
from jax.experimental import pallas as pl
from jax.experimental.pallas import tpu as pltpu


# ----------------------------------------------------------------------------
# Host-side weight packing (done ONCE at init; NOT in the per-call path).
# ----------------------------------------------------------------------------
def _pack_complex_linear(w_re, w_im, b_re, b_im):
    """(Din,Dout) complex affine -> real block matrix acting on [xr | xi].

    [xr | xi] @ [[wr, wi], [-wi, wr]] + [br | bi]  =  [yr | yi]
    """
    w = jnp.concatenate(
        [jnp.concatenate([w_re, w_im], axis=1),
         jnp.concatenate([-w_im, w_re], axis=1)], axis=0)      # (2Din, 2Dout)
    b = jnp.concatenate([b_re, b_im], axis=1)                  # (1, 2Dout)
    return w, b


def pack_attention_params(params, D, H):
    """Pack Q/K/V/O ComplexLinear weights for the fused kernel.

    w_qkv layout (2D, 8D), HEAD-MAJOR: head h occupies columns
    [h*8*dk, (h+1)*8*dk)  (one contiguous 128-lane block for dk=16) holding
      [ q_h(re|im) | k_h(re|im) | k_rot_h(-im|re) | v_h(re|im) ].
    The conj rotation needed for Im(Q conj(K)^T) is baked into k_rot.
    wo is the packed out-proj with INPUT rows permuted to the per-head
    interleaved [re_h|im_h] layout the kernel produces.
    """
    dk = D // H
    wq, bq = _pack_complex_linear(*params["q"])
    wk, bk = _pack_complex_linear(*params["k"])
    wv, bv = _pack_complex_linear(*params["v"])
    wo, bo = _pack_complex_linear(*params["o"])

    cols_w, cols_b, row_perm = [], [], []
    for h in range(H):
        re = slice(h * dk, (h + 1) * dk)
        im = slice(D + h * dk, D + (h + 1) * dk)
        cols_w += [jnp.concatenate([wq[:, re], wq[:, im]], axis=1),     # q_h
                   jnp.concatenate([wk[:, re], wk[:, im]], axis=1),     # k_h
                   jnp.concatenate([-wk[:, im], wk[:, re]], axis=1),    # k_rot_h
                   jnp.concatenate([wv[:, re], wv[:, im]], axis=1)]     # v_h
        cols_b += [jnp.concatenate([bq[:, re], bq[:, im]], axis=1),
                   jnp.concatenate([bk[:, re], bk[:, im]], axis=1),
                   jnp.concatenate([-bk[:, im], bk[:, re]], axis=1),
                   jnp.concatenate([bv[:, re], bv[:, im]], axis=1)]
        row_perm += list(range(h * dk, (h + 1) * dk))
        row_perm += list(range(D + h * dk, D + (h + 1) * dk))

    w_qkv = jnp.concatenate(cols_w, axis=1)                     # (2D, 8D)
    b_qkv = jnp.concatenate(cols_b, axis=1)                     # (1, 8D)
    wo_perm = wo[np.asarray(row_perm, np.int32), :]             # (2D, 2D)

    return {
        "w_qkv": w_qkv.astype(jnp.bfloat16),
        "b_qkv": b_qkv.astype(jnp.float32),
        "wo": wo_perm.astype(jnp.bfloat16),
        "bo": bo.astype(jnp.float32),
    }


# ----------------------------------------------------------------------------
# Fused kernel: one grid step = one batch element (S_pad, *) tile.
# ----------------------------------------------------------------------------
def _fused_attention_kernel(x_ref, wqkv_ref, bqkv_ref, wo_ref, bo_ref, out_ref,
                            *, S, S_pad, H, dk):
    """x_ref    : (S_pad, 2D)  bf16  [xr | xi] for one batch (rows >= S are 0)
       wqkv_ref : (2D, 8D)     bf16  head-major packed Q/K/K_rot/V projection
       bqkv_ref : (1, 8D)      f32
       wo_ref   : (2D, 2D)     bf16  out-proj (rows in per-head layout)
       bo_ref   : (1, 2D)      f32
       out_ref  : (S_pad, 2D)  f32   [out_re | out_im]
    """
    D2 = 2 * dk           # packed per-head width (re|im)            = 32
    HW = 4 * D2           # per-head column block in the projection  = 128
    dims = (((1,), (1,)), ((), ()))          # A @ B^T (contract feature dim)

    # Fused Q / K / K_rot / V projection: one (S_pad,2D) @ (2D,8D) matmul.
    qkv = jnp.dot(x_ref[...], wqkv_ref[...],
                  preferred_element_type=jnp.float32) + bqkv_ref[...]
    qkv_bf = qkv.astype(jnp.bfloat16)        # single full-width cast

    # Padded key columns must not leak into the softmax (the cos(angle) guard
    # would otherwise assign them logit +10).
    key_valid = lax.broadcasted_iota(jnp.int32, (S_pad, S_pad), 1) < S

    wo = wo_ref[...]
    bo = bo_ref[...]

    per_head = []
    for h in range(H):                       # H = 4, unrolled
        blk = qkv_bf[:, h * HW:(h + 1) * HW]           # aligned 128-lane block
        q     = blk[:, 0 * D2:1 * D2]                  # [qr | qi]
        k     = blk[:, 1 * D2:2 * D2]                  # [kr | ki]
        k_rot = blk[:, 2 * D2:3 * D2]                  # [-ki | kr]
        v     = blk[:, 3 * D2:4 * D2]                  # [vr | vi]

        # Complex scores via packed real dots (scaling dropped: cos(angle) is
        # scale-invariant):  s_re = qr@kr^T + qi@ki^T,  s_im = qi@kr^T - qr@ki^T
        s_re = lax.dot_general(q, k, dims, preferred_element_type=jnp.float32)
        s_im = lax.dot_general(q, k_rot, dims,
                               preferred_element_type=jnp.float32)

        # 10 * cos(angle(s)) == 10 * s_re / |s|   (angle(0)=0 -> cos=1)
        mag2 = s_re * s_re + s_im * s_im
        safe = mag2 > 0.0
        logits = 10.0 * jnp.where(
            safe, s_re * lax.rsqrt(jnp.where(safe, mag2, 1.0)), 1.0)

        # softmax over valid keys; logits are bounded to [-10, 10] so no
        # max-subtraction is needed.
        e = jnp.where(key_valid, jnp.exp(logits), 0.0)
        w = e * pl.reciprocal(jnp.sum(e, axis=-1, keepdims=True), approx=True)

        # head output: [out_re | out_im]  (S_pad, 2*dk)
        per_head.append(jnp.dot(w.astype(jnp.bfloat16), v,
                                preferred_element_type=jnp.float32))

    attn = jnp.concatenate(per_head, axis=-1)                   # (S_pad, 2D)
    out_ref[...] = jnp.dot(attn.astype(jnp.bfloat16), wo,
                           preferred_element_type=jnp.float32) + bo


# ----------------------------------------------------------------------------
# Per-call wrapper: pad + reshape x, single pallas_call, unpad.
# ----------------------------------------------------------------------------
def attention_forward(q_re, q_im, y_re, y_im, packed, num_heads=4):
    B, nq, D = q_re.shape
    H = num_heads
    dk = D // H
    S = nq + 1
    S_pad = max(16, -(-S // 16) * 16)        # bf16 sublane-tile aligned rows

    # pro_q(q)/pro_q(y) followed by cat along seq == project cat([q, y])
    x_re = jnp.concatenate([q_re, y_re], axis=1)                 # (B, S, D)
    x_im = jnp.concatenate([q_im, y_im], axis=1)
    x_big = jnp.concatenate([x_re, x_im], axis=-1)               # (B, S, 2D)
    x_big = jnp.pad(x_big, ((0, 0), (0, S_pad - S), (0, 0)))     # (B, S_pad, 2D)
    x_big = x_big.reshape(B * S_pad, 2 * D).astype(jnp.bfloat16)

    kernel = functools.partial(_fused_attention_kernel,
                               S=S, S_pad=S_pad, H=H, dk=dk)
    out = pl.pallas_call(
        kernel,
        out_shape=jax.ShapeDtypeStruct((B * S_pad, 2 * D), jnp.float32),
        grid=(B,),
        in_specs=[
            pl.BlockSpec((S_pad, 2 * D), lambda b: (b, 0)),      # x (per batch)
            pl.BlockSpec((2 * D, 8 * D), lambda b: (0, 0)),      # w_qkv (resident)
            pl.BlockSpec((1, 8 * D), lambda b: (0, 0)),          # b_qkv
            pl.BlockSpec((2 * D, 2 * D), lambda b: (0, 0)),      # wo
            pl.BlockSpec((1, 2 * D), lambda b: (0, 0)),          # bo
        ],
        out_specs=pl.BlockSpec((S_pad, 2 * D), lambda b: (b, 0)),
        compiler_params=pltpu.CompilerParams(
            dimension_semantics=("parallel",)),                  # v7x: 2 TCs
    )(x_big, packed["w_qkv"], packed["b_qkv"], packed["wo"], packed["bo"])

    out = out.reshape(B, S_pad, 2 * D)[:, :S, :]                 # drop pad rows
    out_re, out_im = out[..., :D], out[..., D:]
    heads = (out_re[:, :-1, :], out_im[:, :-1, :])               # (B, nq, D)
    heads_y = (out_re[:, -1:, :], out_im[:, -1:, :])             # (B, 1, D)
    return heads, heads_y


# ----------------------------------------------------------------------------
# Pure-JAX reference (mirrors the PyTorch forward; bf16 MXU operands / f32
# accumulation, i.e. the same matmul precision as the kernel)
# ----------------------------------------------------------------------------
def jax_reference(q_re, q_im, y_re, y_im, params, num_heads):
    bf = jnp.bfloat16

    def mm(a, b):
        return jnp.matmul(a.astype(bf), b.astype(bf),
                          preferred_element_type=jnp.float32)

    def clin(xr, xi, p):
        wr, wi, br, bi = p
        return mm(xr, wr) - mm(xi, wi) + br, mm(xr, wi) + mm(xi, wr) + bi

    B, nq, D = q_re.shape
    H = num_heads
    dk = D // H
    S = nq + 1
    scaling = float(dk) ** (-0.5)

    xr = jnp.concatenate([q_re, y_re], axis=1)          # (B, S, D)
    xi = jnp.concatenate([q_im, y_im], axis=1)

    Qr, Qi = clin(xr, xi, params["q"])
    Kr, Ki = clin(xr, xi, params["k"])
    Vr, Vi = clin(xr, xi, params["v"])

    def split(x):                                       # (B,S,D) -> (H,B,S,dk)
        return x.reshape(B, S, H, dk).transpose(2, 0, 1, 3)

    Qr, Qi, Kr, Ki, Vr, Vi = map(split, (Qr, Qi, Kr, Ki, Vr, Vi))

    def bmm_t(a, b):
        return jnp.einsum("hbqd,hbkd->hbqk", a.astype(bf), b.astype(bf),
                          preferred_element_type=jnp.float32)

    def bmm(a, b):
        return jnp.einsum("hbqk,hbkd->hbqd", a.astype(bf), b.astype(bf),
                          preferred_element_type=jnp.float32)

    s_re = scaling * (bmm_t(Qr, Kr) + bmm_t(Qi, Ki))
    s_im = scaling * (bmm_t(Qi, Kr) - bmm_t(Qr, Ki))
    logits = 10.0 * jnp.cos(jnp.arctan2(s_im, s_re))
    w = jax.nn.softmax(logits, axis=-1)
    o_re, o_im = bmm(w, Vr), bmm(w, Vi)
    hr = o_re.transpose(1, 2, 0, 3).reshape(B, S, D)
    hi = o_im.transpose(1, 2, 0, 3).reshape(B, S, D)
    return clin(hr, hi, params["o"])                    # (B,S,D) re, im


# ----------------------------------------------------------------------------
# NumPy float64 mirror of the PyTorch forward (gross-error sanity check)
# ----------------------------------------------------------------------------
def np_reference(q_re, q_im, y_re, y_im, params, num_heads):
    qc = np.asarray(q_re, np.float64) + 1j * np.asarray(q_im, np.float64)
    yc = np.asarray(y_re, np.float64) + 1j * np.asarray(y_im, np.float64)

    def clin(x, p):
        wr, wi, br, bi = [np.asarray(a, np.float64) for a in p]
        return x @ (wr + 1j * wi) + (br + 1j * bi)

    B, nq, D = qc.shape
    H = num_heads
    dk = D // H
    S = nq + 1
    scaling = dk ** (-0.5)

    xy = np.concatenate([qc, yc], axis=1)
    Q, K, V = clin(xy, params["q"]), clin(xy, params["k"]), clin(xy, params["v"])

    def split_heads(x):
        return x.reshape(B, S, H, dk).transpose(2, 0, 1, 3)

    Qh, Kh, Vh = split_heads(Q), split_heads(K), split_heads(V)
    s = scaling * np.matmul(Qh, np.conj(Kh).transpose(0, 1, 3, 2))
    logits = 10.0 * np.cos(np.angle(s))
    m = np.max(logits, axis=-1, keepdims=True)
    e = np.exp(logits - m)
    w = e / np.sum(e, axis=-1, keepdims=True)
    attn = np.matmul(w, Vh)
    heads_all = attn.transpose(1, 2, 0, 3).reshape(B, S, H * dk)
    out = clin(heads_all, params["o"])
    return out[:, :-1, :], out[:, -1:, :]


# ----------------------------------------------------------------------------
if __name__ == "__main__":
    B, NQ, D, H = 2, 8, 64, 4  # embed_dim=64, num_heads=4 -> head_dim=16

    key = jax.random.PRNGKey(0)
    ks = jax.random.split(key, 8)

    q_re = jax.random.normal(ks[0], (B, NQ, D), jnp.float32)
    q_im = jax.random.normal(ks[1], (B, NQ, D), jnp.float32)
    y_re = jax.random.normal(ks[2], (B, 1, D), jnp.float32)
    y_im = jax.random.normal(ks[3], (B, 1, D), jnp.float32)

    def make_linear(kw):
        k0, k1, k2, k3 = jax.random.split(kw, 4)
        w_re = 0.1 * jax.random.normal(k0, (D, D), jnp.float32)
        w_im = 0.1 * jax.random.normal(k1, (D, D), jnp.float32)
        b_re = 0.05 * jax.random.normal(k2, (1, D), jnp.float32)
        b_im = 0.05 * jax.random.normal(k3, (1, D), jnp.float32)
        return (w_re, w_im, b_re, b_im)

    params = {
        "q": make_linear(ks[4]),
        "k": make_linear(ks[5]),
        "v": make_linear(ks[6]),
        "o": make_linear(ks[7]),
    }

    # init-time packing (hoisted out of the per-call path)
    packed = pack_attention_params(params, D, H)

    fwd = jax.jit(functools.partial(attention_forward, num_heads=H))
    (h_re, h_im), (hy_re, hy_im) = jax.block_until_ready(
        fwd(q_re, q_im, y_re, y_im, packed))

    assert h_re.shape == (B, NQ, D) and hy_re.shape == (B, 1, D)
    got = (np.asarray(jnp.concatenate([h_re, hy_re], axis=1))
           + 1j * np.asarray(jnp.concatenate([h_im, hy_im], axis=1)))

    # (1) main check: pure-JAX reference at the same (bf16-operand) precision
    ref_r, ref_i = jax_reference(q_re, q_im, y_re, y_im, params, H)
    ref32 = np.asarray(ref_r) + 1j * np.asarray(ref_i)
    err = np.abs(got - ref32)
    assert float(np.median(err)) < 5e-3, float(np.median(err))
    assert np.allclose(got, ref32, rtol=2e-2, atol=1e-2), float(err.max())

    # (2) robust sanity check vs float64 NumPy mirror of the PyTorch forward
    #     (median error is immune to the intrinsic angle(s~0) instability)
    ref64_h, ref64_hy = np_reference(q_re, q_im, y_re, y_im, params, H)
    ref64 = np.concatenate([ref64_h, ref64_hy], axis=1)
    assert float(np.median(np.abs(got - ref64))) < 2e-2

    print("KERNEL_OK")
</pallas_src>

<mosaic_0001>
module attributes {stable_mosaic.version = 11 : i64} {
  func.func @_fused_attention_kernel(%arg0: i32, %arg1: memref<16x128xbf16, #tpu.memory_space<vmem>>, %arg2: memref<128x512xbf16, #tpu.memory_space<vmem>>, %arg3: memref<1x512xf32, #tpu.memory_space<vmem>>, %arg4: memref<128x128xbf16, #tpu.memory_space<vmem>>, %arg5: memref<1x128xf32, #tpu.memory_space<vmem>>, %arg6: memref<16x128xf32, #tpu.memory_space<vmem>>) attributes {dimension_semantics = [#tpu.dimension_semantics<parallel>], iteration_bounds = array<i64: 2>, scalar_prefetch = 0 : i64, scratch_operands = 0 : i64, tpu.core_type = #tpu.core_type<tc>, window_params = [{transform_indices = @transform_0, window_bounds = array<i64: 16, 128>}, {pipeline_mode = #tpu.pipeline_mode<synchronous>, transform_indices = @transform_1, window_bounds = array<i64: 128, 512>}, {pipeline_mode = #tpu.pipeline_mode<synchronous>, transform_indices = @transform_2, window_bounds = array<i64: 1, 512>}, {pipeline_mode = #tpu.pipeline_mode<synchronous>, transform_indices = @transform_3, window_bounds = array<i64: 128, 128>}, {pipeline_mode = #tpu.pipeline_mode<synchronous>, transform_indices = @transform_4, window_bounds = array<i64: 1, 128>}, {transform_indices = @transform_5, window_bounds = array<i64: 16, 128>}]} {
    %c0 = arith.constant 0 : index
    %c0_0 = arith.constant 0 : index
    %0 = vector.load %arg1[%c0, %c0_0] : memref<16x128xbf16, #tpu.memory_space<vmem>>, vector<16x128xbf16>
    %c0_1 = arith.constant 0 : index
    %c0_2 = arith.constant 0 : index
    %1 = vector.load %arg2[%c0_1, %c0_2] : memref<128x512xbf16, #tpu.memory_space<vmem>>, vector<128x512xbf16>
    %cst = arith.constant dense<0.000000e+00> : vector<16x512xf32>
    %2 = tpu.matmul %0, %1, %cst {dimension_numbers = #tpu.dot_dimension_numbers<[1], [0], [0], [1], [0, 0, 1, 1], [], []>} : vector<16x128xbf16>, vector<128x512xbf16>, vector<16x512xf32> -> vector<16x512xf32>
    %c0_3 = arith.constant 0 : index
    %c0_4 = arith.constant 0 : index
    %3 = vector.load %arg3[%c0_3, %c0_4] : memref<1x512xf32, #tpu.memory_space<vmem>>, vector<1x512xf32>
    %4 = vector.broadcast %3 : vector<1x512xf32> to vector<16x512xf32>
    %5 = arith.addf %2, %4 : vector<16x512xf32>
    %6 = arith.truncf %5 : vector<16x512xf32> to vector<16x512xbf16>
    %7 = tpu.iota {dimensions = array<i32: 1>} : vector<16x16xi32>
    %c9_i32 = arith.constant 9 : i32
    %8 = vector.broadcast %c9_i32 : i32 to vector<16x16xi32>
    %9 = arith.cmpi slt, %7, %8 : vector<16x16xi32>
    %c0_5 = arith.constant 0 : index
    %c0_6 = arith.constant 0 : index
    %10 = vector.load %arg4[%c0_5, %c0_6] : memref<128x128xbf16, #tpu.memory_space<vmem>>, vector<128x128xbf16>
    %c0_7 = arith.constant 0 : index
    %c0_8 = arith.constant 0 : index
    %11 = vector.load %arg5[%c0_7, %c0_8] : memref<1x128xf32, #tpu.memory_space<vmem>>, vector<1x128xf32>
    %12 = vector.extract_strided_slice %6 {offsets = [0, 0], sizes = [16, 128], strides = [1, 1]} : vector<16x512xbf16> to vector<16x128xbf16>
    %13 = vector.extract_strided_slice %12 {offsets = [0, 0], sizes = [16, 32], strides = [1, 1]} : vector<16x128xbf16> to vector<16x32xbf16>
    %14 = vector.extract_strided_slice %12 {offsets = [0, 32], sizes = [16, 32], strides = [1, 1]} : vector<16x128xbf16> to vector<16x32xbf16>
    %15 = vector.extract_strided_slice %12 {offsets = [0, 64], sizes = [16, 32], strides = [1, 1]} : vector<16x128xbf16> to vector<16x32xbf16>
    %16 = vector.extract_strided_slice %12 {offsets = [0, 96], sizes = [16, 32], strides = [1, 1]} : vector<16x128xbf16> to vector<16x32xbf16>
    %cst_9 = arith.constant dense<0.000000e+00> : vector<16x16xf32>
    %17 = tpu.matmul %13, %14, %cst_9 {dimension_numbers = #tpu.dot_dimension_numbers<[1], [1], [0], [0], [0, 0, 1, 0], [], []>} : vector<16x32xbf16>, vector<16x32xbf16>, vector<16x16xf32> -> vector<16x16xf32>
    %cst_10 = arith.constant dense<0.000000e+00> : vector<16x16xf32>
    %18 = tpu.matmul %13, %15, %cst_10 {dimension_numbers = #tpu.dot_dimension_numbers<[1], [1], [0], [0], [0, 0, 1, 0], [], []>} : vector<16x32xbf16>, vector<16x32xbf16>, vector<16x16xf32> -> vector<16x16xf32>
    %19 = arith.mulf %17, %17 : vector<16x16xf32>
    %20 = arith.mulf %18, %18 : vector<16x16xf32>
    %21 = arith.addf %19, %20 : vector<16x16xf32>
    %cst_11 = arith.constant 0.000000e+00 : f32
    %22 = vector.broadcast %cst_11 : f32 to vector<16x16xf32>
    %23 = arith.cmpf ogt, %21, %22 : vector<16x16xf32>
    %cst_12 = arith.constant 1.000000e+00 : f32
    %24 = vector.broadcast %cst_12 : f32 to vector<16x16xf32>
    %25 = arith.select %23, %21, %24 : vector<16x16xi1>, vector<16x16xf32>
    %26 = math.rsqrt %25 : vector<16x16xf32>
    %27 = arith.mulf %17, %26 : vector<16x16xf32>
    %cst_13 = arith.constant 1.000000e+00 : f32
    %28 = vector.broadcast %cst_13 : f32 to vector<16x16xf32>
    %29 = arith.select %23, %27, %28 : vector<16x16xi1>, vector<16x16xf32>
    %cst_14 = arith.constant 1.000000e+01 : f32
    %30 = vector.broadcast %cst_14 : f32 to vector<16x16xf32>
    %31 = arith.mulf %30, %29 : vector<16x16xf32>
    %32 = math.exp %31 : vector<16x16xf32>
    %cst_15 = arith.constant 0.000000e+00 : f32
    %33 = vector.broadcast %cst_15 : f32 to vector<16x16xf32>
    %34 = arith.select %9, %32, %33 : vector<16x16xi1>, vector<16x16xf32>
    %cst_16 = arith.constant dense<0.000000e+00> : vector<16xf32>
    %35 = vector.multi_reduction <add>, %34, %cst_16 [1] : vector<16x16xf32> to vector<16xf32>
    %36 = vector.shape_cast %35 : vector<16xf32> to vector<16x1xf32>
    %37 = tpu.reciprocal %36 {approx = true} : vector<16x1xf32> -> vector<16x1xf32>
    %38 = vector.broadcast %37 : vector<16x1xf32> to vector<16x16xf32>
    %39 = arith.mulf %34, %38 : vector<16x16xf32>
    %40 = arith.truncf %39 : vector<16x16xf32> to vector<16x16xbf16>
    %cst_17 = arith.constant dense<0.000000e+00> : vector<16x32xf32>
    %41 = tpu.matmul %40, %16, %cst_17 {dimension_numbers = #tpu.dot_dimension_numbers<[1], [0], [0], [1], [0, 0, 1, 1], [], []>} : vector<16x16xbf16>, vector<16x32xbf16>, vector<16x32xf32> -> vector<16x32xf32>
    %42 = vector.extract_strided_slice %6 {offsets = [0, 128], sizes = [16, 128], strides = [1, 1]} : vector<16x512xbf16> to vector<16x128xbf16>
    %43 = vector.extract_strided_slice %42 {offsets = [0, 0], sizes = [16, 32], strides = [1, 1]} : vector<16x128xbf16> to vector<16x32xbf16>
    %44 = vector.extract_strided_slice %42 {offsets = [0, 32], sizes = [16, 32], strides = [1, 1]} : vector<16x128xbf16> to vector<16x32xbf16>
    %45 = vector.extract_strided_slice %42 {offsets = [0, 64], sizes = [16, 32], strides = [1, 1]} : vector<16x128xbf16> to vector<16x32xbf16>
    %46 = vector.extract_strided_slice %42 {offsets = [0, 96], sizes = [16, 32], strides = [1, 1]} : vector<16x128xbf16> to vector<16x32xbf16>
    %cst_18 = arith.constant dense<0.000000e+00> : vector<16x16xf32>
    %47 = tpu.matmul %43, %44, %cst_18 {dimension_numbers = #tpu.dot_dimension_numbers<[1], [1], [0], [0], [0, 0, 1, 0], [], []>} : vector<16x32xbf16>, vector<16x32xbf16>, vector<16x16xf32> -> vector<16x16xf32>
    %cst_19 = arith.constant dense<0.000000e+00> : vector<16x16xf32>
    %48 = tpu.matmul %43, %45, %cst_19 {dimension_numbers = #tpu.dot_dimension_numbers<[1], [1], [0], [0], [0, 0, 1, 0], [], []>} : vector<16x32xbf16>, vector<16x32xbf16>, vector<16x16xf32> -> vector<16x16xf32>
    %49 = arith.mulf %47, %47 : vector<16x16xf32>
    %50 = arith.mulf %48, %48 : vector<16x16xf32>
    %51 = arith.addf %49, %50 : vector<16x16xf32>
    %cst_20 = arith.constant 0.000000e+00 : f32
    %52 = vector.broadcast %cst_20 : f32 to vector<16x16xf32>
    %53 = arith.cmpf ogt, %51, %52 : vector<16x16xf32>
    %cst_21 = arith.constant 1.000000e+00 : f32
    %54 = vector.broadcast %cst_21 : f32 to vector<16x16xf32>
    %55 = arith.select %53, %51, %54 : vector<16x16xi1>, vector<16x16xf32>
    %56 = math.rsqrt %55 : vector<16x16xf32>
    %57 = arith.mulf %47, %56 : vector<16x16xf32>
    %cst_22 = arith.constant 1.000000e+00 : f32
    %58 = vector.broadcast %cst_22 : f32 to vector<16x16xf32>
    %59 = arith.select %53, %57, %58 : vector<16x16xi1>, vector<16x16xf32>
    %cst_23 = arith.constant 1.000000e+01 : f32
    %60 = vector.broadcast %cst_23 : f32 to vector<16x16xf32>
    %61 = arith.mulf %60, %59 : vector<16x16xf32>
    %62 = math.exp %61 : vector<16x16xf32>
    %cst_24 = arith.constant 0.000000e+00 : f32
    %63 = vector.broadcast %cst_24 : f32 to vector<16x16xf32>
    %64 = arith.select %9, %62, %63 : vector<16x16xi1>, vector<16x16xf32>
    %cst_25 = arith.constant dense<0.000000e+00> : vector<16xf32>
    %65 = vector.multi_reduction <add>, %64, %cst_25 [1] : vector<16x16xf32> to vector<16xf32>
    %66 = vector.shape_cast %65 : vector<16xf32> to vector<16x1xf32>
    %67 = tpu.reciprocal %66 {approx = true} : vector<16x1xf32> -> vector<16x1xf32>
    %68 = vector.broadcast %67 : vector<16x1xf32> to vector<16x16xf32>
    %69 = arith.mulf %64, %68 : vector<16x16xf32>
    %70 = arith.truncf %69 : vector<16x16xf32> to vector<16x16xbf16>
    %cst_26 = arith.constant dense<0.000000e+00> : vector<16x32xf32>
    %71 = tpu.matmul %70, %46, %cst_26 {dimension_numbers = #tpu.dot_dimension_numbers<[1], [0], [0], [1], [0, 0, 1, 1], [], []>} : vector<16x16xbf16>, vector<16x32xbf16>, vector<16x32xf32> -> vector<16x32xf32>
    %72 = vector.extract_strided_slice %6 {offsets = [0, 256], sizes = [16, 128], strides = [1, 1]} : vector<16x512xbf16> to vector<16x128xbf16>
    %73 = vector.extract_strided_slice %72 {offsets = [0, 0], sizes = [16, 32], strides = [1, 1]} : vector<16x128xbf16> to vector<16x32xbf16>
    %74 = vector.extract_strided_slice %72 {offsets = [0, 32], sizes = [16, 32], strides = [1, 1]} : vector<16x128xbf16> to vector<16x32xbf16>
    %75 = vector.extract_strided_slice %72 {offsets = [0, 64], sizes = [16, 32], strides = [1, 1]} : vector<16x128xbf16> to vector<16x32xbf16>
    %76 = vector.extract_strided_slice %72 {offsets = [0, 96], sizes = [16, 32], strides = [1, 1]} : vector<16x128xbf16> to vector<16x32xbf16>
    %cst_27 = arith.constant dense<0.000000e+00> : vector<16x16xf32>
    %77 = tpu.matmul %73, %74, %cst_27 {dimension_numbers = #tpu.dot_dimension_numbers<[1], [1], [0], [0], [0, 0, 1, 0], [], []>} : vector<16x32xbf16>, vector<16x32xbf16>, vector<16x16xf32> -> vector<16x16xf32>
    %cst_28 = arith.constant dense<0.000000e+00> : vector<16x16xf32>
    %78 = tpu.matmul %73, %75, %cst_28 {dimension_numbers = #tpu.dot_dimension_numbers<[1], [1], [0], [0], [0, 0, 1, 0], [], []>} : vector<16x32xbf16>, vector<16x32xbf16>, vector<16x16xf32> -> vector<16x16xf32>
    %79 = arith.mulf %77, %77 : vector<16x16xf32>
    %80 = arith.mulf %78, %78 : vector<16x16xf32>
    %81 = arith.addf %79, %80 : vector<16x16xf32>
    %cst_29 = arith.constant 0.000000e+00 : f32
    %82 = vector.broadcast %cst_29 : f32 to vector<16x16xf32>
    %83 = arith.cmpf ogt, %81, %82 : vector<16x16xf32>
    %cst_30 = arith.constant 1.000000e+00 : f32
    %84 = vector.broadcast %cst_30 : f32 to vector<16x16xf32>
    %85 = arith.select %83, %81, %84 : vector<16x16xi1>, vector<16x16xf32>
    %86 = math.rsqrt %85 : vector<16x16xf32>
    %87 = arith.mulf %77, %86 : vector<16x16xf32>
    %cst_31 = arith.constant 1.000000e+00 : f32
    %88 = vector.broadcast %cst_31 : f32 to vector<16x16xf32>
    %89 = arith.select %83, %87, %88 : vector<16x16xi1>, vector<16x16xf32>
    %cst_32 = arith.constant 1.000000e+01 : f32
    %90 = vector.broadcast %cst_32 : f32 to vector<16x16xf32>
    %91 = arith.mulf %90, %89 : vector<16x16xf32>
    %92 = math.exp %91 : vector<16x16xf32>
    %cst_33 = arith.constant 0.000000e+00 : f32
    %93 = vector.broadcast %cst_33 : f32 to vector<16x16xf32>
    %94 = arith.select %9, %92, %93 : vector<16x16xi1>, vector<16x16xf32>
    %cst_34 = arith.constant dense<0.000000e+00> : vector<16xf32>
    %95 = vector.multi_reduction <add>, %94, %cst_34 [1] : vector<16x16xf32> to vector<16xf32>
    %96 = vector.shape_cast %95 : vector<16xf32> to vector<16x1xf32>
    %97 = tpu.reciprocal %96 {approx = true} : vector<16x1xf32> -> vector<16x1xf32>
    %98 = vector.broadcast %97 : vector<16x1xf32> to vector<16x16xf32>
    %99 = arith.mulf %94, %98 : vector<16x16xf32>
    %100 = arith.truncf %99 : vector<16x16xf32> to vector<16x16xbf16>
    %cst_35 = arith.constant dense<0.000000e+00> : vector<16x32xf32>
    %101 = tpu.matmul %100, %76, %cst_35 {dimension_numbers = #tpu.dot_dimension_numbers<[1], [0], [0], [1], [0, 0, 1, 1], [], []>} : vector<16x16xbf16>, vector<16x32xbf16>, vector<16x32xf32> -> vector<16x32xf32>
    %102 = vector.extract_strided_slice %6 {offsets = [0, 384], sizes = [16, 128], strides = [1, 1]} : vector<16x512xbf16> to vector<16x128xbf16>
    %103 = vector.extract_strided_slice %102 {offsets = [0, 0], sizes = [16, 32], strides = [1, 1]} : vector<16x128xbf16> to vector<16x32xbf16>
    %104 = vector.extract_strided_slice %102 {offsets = [0, 32], sizes = [16, 32], strides = [1, 1]} : vector<16x128xbf16> to vector<16x32xbf16>
    %105 = vector.extract_strided_slice %102 {offsets = [0, 64], sizes = [16, 32], strides = [1, 1]} : vector<16x128xbf16> to vector<16x32xbf16>
    %106 = vector.extract_strided_slice %102 {offsets = [0, 96], sizes = [16, 32], strides = [1, 1]} : vector<16x128xbf16> to vector<16x32xbf16>
    %cst_36 = arith.constant dense<0.000000e+00> : vector<16x16xf32>
    %107 = tpu.matmul %103, %104, %cst_36 {dimension_numbers = #tpu.dot_dimension_numbers<[1], [1], [0], [0], [0, 0, 1, 0], [], []>} : vector<16x32xbf16>, vector<16x32xbf16>, vector<16x16xf32> -> vector<16x16xf32>
    %cst_37 = arith.constant dense<0.000000e+00> : vector<16x16xf32>
    %108 = tpu.matmul %103, %105, %cst_37 {dimension_numbers = #tpu.dot_dimension_numbers<[1], [1], [0], [0], [0, 0, 1, 0], [], []>} : vector<16x32xbf16>, vector<16x32xbf16>, vector<16x16xf32> -> vector<16x16xf32>
    %109 = arith.mulf %107, %107 : vector<16x16xf32>
    %110 = arith.mulf %108, %108 : vector<16x16xf32>
    %111 = arith.addf %109, %110 : vector<16x16xf32>
    %cst_38 = arith.constant 0.000000e+00 : f32
    %112 = vector.broadcast %cst_38 : f32 to vector<16x16xf32>
    %113 = arith.cmpf ogt, %111, %112 : vector<16x16xf32>
    %cst_39 = arith.constant 1.000000e+00 : f32
    %114 = vector.broadcast %cst_39 : f32 to vector<16x16xf32>
    %115 = arith.select %113, %111, %114 : vector<16x16xi1>, vector<16x16xf32>
    %116 = math.rsqrt %115 : vector<16x16xf32>
    %117 = arith.mulf %107, %116 : vector<16x16xf32>
    %cst_40 = arith.constant 1.000000e+00 : f32
    %118 = vector.broadcast %cst_40 : f32 to vector<16x16xf32>
    %119 = arith.select %113, %117, %118 : vector<16x16xi1>, vector<16x16xf32>
    %cst_41 = arith.constant 1.000000e+01 : f32
    %120 = vector.broadcast %cst_41 : f32 to vector<16x16xf32>
    %121 = arith.mulf %120, %119 : vector<16x16xf32>
    %122 = math.exp %121 : vector<16x16xf32>
    %cst_42 = arith.constant 0.000000e+00 : f32
    %123 = vector.broadcast %cst_42 : f32 to vector<16x16xf32>
    %124 = arith.select %9, %122, %123 : vector<16x16xi1>, vector<16x16xf32>
    %cst_43 = arith.constant dense<0.000000e+00> : vector<16xf32>
    %125 = vector.multi_reduction <add>, %124, %cst_43 [1] : vector<16x16xf32> to vector<16xf32>
    %126 = vector.shape_cast %125 : vector<16xf32> to vector<16x1xf32>
    %127 = tpu.reciprocal %126 {approx = true} : vector<16x1xf32> -> vector<16x1xf32>
    %128 = vector.broadcast %127 : vector<16x1xf32> to vector<16x16xf32>
    %129 = arith.mulf %124, %128 : vector<16x16xf32>
    %130 = arith.truncf %129 : vector<16x16xf32> to vector<16x16xbf16>
    %cst_44 = arith.constant dense<0.000000e+00> : vector<16x32xf32>
    %131 = tpu.matmul %130, %106, %cst_44 {dimension_numbers = #tpu.dot_dimension_numbers<[1], [0], [0], [1], [0, 0, 1, 1], [], []>} : vector<16x16xbf16>, vector<16x32xbf16>, vector<16x32xf32> -> vector<16x32xf32>
    %132 = tpu.concatenate %41, %71, %101, %131 in 1 : vector<16x32xf32>, vector<16x32xf32>, vector<16x32xf32>, vector<16x32xf32> -> vector<16x128xf32>
    %133 = arith.truncf %132 : vector<16x128xf32> to vector<16x128xbf16>
    %cst_45 = arith.constant dense<0.000000e+00> : vector<16x128xf32>
    %134 = tpu.matmul %133, %10, %cst_45 {dimension_numbers = #tpu.dot_dimension_numbers<[1], [0], [0], [1], [0, 0, 1, 1], [], []>} : vector<16x128xbf16>, vector<128x128xbf16>, vector<16x128xf32> -> vector<16x128xf32>
    %135 = vector.broadcast %11 : vector<1x128xf32> to vector<16x128xf32>
    %136 = arith.addf %134, %135 : vector<16x128xf32>
    %c0_46 = arith.constant 0 : index
    %c0_47 = arith.constant 0 : index
    %137 = vector.load %arg6[%c0_46, %c0_47] : memref<16x128xf32, #tpu.memory_space<vmem>>, vector<16x128xf32>
    tpu.vector_store %arg6[%c0_46, %c0_47], %136 {strides = array<i32>} : memref<16x128xf32, #tpu.memory_space<vmem>>, vector<16x128xf32>,
    return
  }
  func.func @transform_0(%arg0: i32) -> (i32, i32) {
    %c0_i32 = arith.constant 0 : i32
    %c0_i32_0 = arith.constant 0 : i32
    return %arg0, %c0_i32 : i32, i32
  }
  func.func @transform_1(%arg0: i32) -> (i32, i32) {
    %c0_i32 = arith.constant 0 : i32
    %c0_i32_0 = arith.constant 0 : i32
    %c0_i32_1 = arith.constant 0 : i32
    return %c0_i32, %c0_i32_0 : i32, i32
  }
  func.func @transform_2(%arg0: i32) -> (i32, i32) {
    %c0_i32 = arith.constant 0 : i32
    %c0_i32_0 = arith.constant 0 : i32
    %c0_i32_1 = arith.constant 0 : i32
    return %c0_i32, %c0_i32_0 : i32, i32
  }
  func.func @transform_3(%arg0: i32) -> (i32, i32) {
    %c0_i32 = arith.constant 0 : i32
    %c0_i32_0 = arith.constant 0 : i32
    %c0_i32_1 = arith.constant 0 : i32
    return %c0_i32, %c0_i32_0 : i32, i32
  }
  func.func @transform_4(%arg0: i32) -> (i32, i32) {
    %c0_i32 = arith.constant 0 : i32
    %c0_i32_0 = arith.constant 0 : i32
    %c0_i32_1 = arith.constant 0 : i32
    return %c0_i32, %c0_i32_0 : i32, i32
  }
  func.func @transform_5(%arg0: i32) -> (i32, i32) {
    %c0_i32 = arith.constant 0 : i32
    %c0_i32_0 = arith.constant 0 : i32
    return %arg0, %c0_i32 : i32, i32
  }
}

</mosaic_0001>

<llo_original>
// kernel: attention_forward.1
$region0: #{attention_forward.1}
  #allocation0 [shape = 'u32[]', space=smem, size = 0x4, offset = 0x4, fixed_abs, tag = 'smem constant byte address 0x4 - core index']
  #allocation1 [shape = 'u32[72,128]{1,0:T(1,128)}', space=vmem, size = 0x9000, scoped, tag = 'internal scratch']
  %s0 = inlined_call_operand.vmem [shape: bf16[32,128], index: 0, kind: input, shape index: {}]
  %s1 = inlined_call_operand.hbm [shape: bf16[128,512], index: 1, kind: input, shape index: {}]
  %s2 = inlined_call_operand.vmem [shape: f32[1,512], index: 2, kind: input, shape index: {}]
  %s3 = inlined_call_operand.vmem [shape: bf16[128,128], index: 3, kind: input, shape index: {}]
  %s4 = inlined_call_operand.vmem [shape: f32[1,128], index: 4, kind: input, shape index: {}]
  %s5 = inlined_call_operand.vmem [shape: f32[32,128], index: 5, kind: output, shape index: {}]
  %s6 = sld [smem:[#allocation0]]
  $region57: #{attention_forward.1} parent=0
    _
  %s8 = ssub.s32 1, %s6
  %s9 = scalar_select 0, %s8, %s6
  $region1: #{attention_forward.1} parent=0
    #allocation2 [shape = 'u8[131072]{0}', space=vmem, size = 0x20000, scoped, tag = 'input window, operand 1, single buffered']
    #allocation3 [shape = 's32[2]{0}', space=sflag, size = 0x8, scoped, tag = 'scoped memory for attention_forward.1']
    %10 = vsyncpa [#allocation3], 0
    loop: start=0, step=1, limit=4
    $region2: #{attention_forward.1} parent=1 // loop_pre_header
      _
    $region3: #{attention_forward.1} parent=1 // loop_header
      %s12 = sphi 0, %s16
      %p13 = scmp.ge.s32.totalorder %s12, 4
      %s22 = sphi 0, %s24
      %s25 = sphi 0, %s22
      %s26 = sphi 0, %s25
      %s42 = sphi 0, %s26
      %s46 = sphi 0, %s46
      %s48 = sphi 0, %s46
      %s49 = sphi 0, %s48
      %s63 = sphi 0, %s49
      %s67 = sphi 0, %s67
      %s69 = sphi 0, %s67
      %s70 = sphi 0, %s69
      %s84 = sphi 0, %s70
      %s88 = sphi 0, %s88
      %s90 = sphi 0, %s88
      %s91 = sphi 0, %s90
      %s105 = sphi 0, %s91
      %s109 = sphi 0, %s109
      %s111 = sphi 0, %s109
      %s112 = sphi 0, %s111
      %s126 = sphi 0, %s112
      %s132 = sphi 0, %s134
      %s135 = sphi 0, %s132
      %s136 = sphi 0, %s135
      %s152 = sphi 0, %s136
    $region4: #{attention_forward.1} parent=1 // loop_header_branch
      %15 = sbr.rel (%p13) target = $region8
    $region5: #{attention_forward.1} parent=1 // loop_body
      %s17 = ssub.s32 %s12, 1
      %s18 = ssub.s32 %s12, 2
      %s19 = sadd.s32 %s12, 1
      %s20 = ssub.s32 %s12, %s19
      %p21 = scmp.eq.s32.totalorder %s20, 0
      %s23 = sadd.s32 %s22, 1
      %s24 = scalar_select %p21, %s22, %s23
      %p27 = pneg %p21
      %p28 = scmp.eq.s32.totalorder %s12, 1
      %p29 = por %p27, %p28
      %p30 = scmp.ne.s32.totalorder %s22, %s25
      %p31 = scmp.eq.s32.totalorder %s12, 0
      %p32 = por %p30, %p31
      %p33 = scmp.ne.s32.totalorder %s22, %s25
      %p34 = scmp.eq.s32.totalorder %s17, 1
      %p35 = por %p33, %p34
      %p36 = scmp.ne.s32.totalorder %s25, %s26
      %p37 = scmp.eq.s32.totalorder %s17, 0
      %p38 = por %p36, %p37
      %p39 = scmp.ne.s32.totalorder %s25, %s26
      %p40 = scmp.eq.s32.totalorder %s18, 1
      %p41 = por %p39, %p40
      %p43 = scmp.ne.s32.totalorder %s26, %s42
      %p44 = scmp.eq.s32.totalorder %s18, 0
      %p45 = por %p43, %p44
      %s47 = sadd.s32 %s46, 1
      %p50 = scmp.eq.s32.totalorder %s12, 1
      %p51 = scmp.ne.s32.totalorder %s46, %s48
      %p52 = scmp.eq.s32.totalorder %s12, 0
      %p53 = por %p51, %p52
      %p54 = scmp.ne.s32.totalorder %s46, %s48
      %p55 = scmp.eq.s32.totalorder %s17, 1
      %p56 = por %p54, %p55
      %p57 = scmp.ne.s32.totalorder %s48, %s49
      %p58 = scmp.eq.s32.totalorder %s17, 0
      %p59 = por %p57, %p58
      %p60 = scmp.ne.s32.totalorder %s48, %s49
      %p61 = scmp.eq.s32.totalorder %s18, 1
      %p62 = por %p60, %p61
      %p64 = scmp.ne.s32.totalorder %s49, %s63
      %p65 = scmp.eq.s32.totalorder %s18, 0
      %p66 = por %p64, %p65
      %s68 = sadd.s32 %s67, 1
      %p71 = scmp.eq.s32.totalorder %s12, 1
      %p72 = scmp.ne.s32.totalorder %s67, %s69
      %p73 = scmp.eq.s32.totalorder %s12, 0
      %p74 = por %p72, %p73
      %p75 = scmp.ne.s32.totalorder %s67, %s69
      %p76 = scmp.eq.s32.totalorder %s17, 1
      %p77 = por %p75, %p76
      %p78 = scmp.ne.s32.totalorder %s69, %s70
      %p79 = scmp.eq.s32.totalorder %s17, 0
      %p80 = por %p78, %p79
      %p81 = scmp.ne.s32.totalorder %s69, %s70
      %p82 = scmp.eq.s32.totalorder %s18, 1
      %p83 = por %p81, %p82
      %p85 = scmp.ne.s32.totalorder %s70, %s84
      %p86 = scmp.eq.s32.totalorder %s18, 0
      %p87 = por %p85, %p86
      %s89 = sadd.s32 %s88, 1
      %p92 = scmp.eq.s32.totalorder %s12, 1
      %p93 = scmp.ne.s32.totalorder %s88, %s90
      %p94 = scmp.eq.s32.totalorder %s12, 0
      %p95 = por %p93, %p94
      %p96 = scmp.ne.s32.totalorder %s88, %s90
      %p97 = scmp.eq.s32.totalorder %s17, 1
      %p98 = por %p96, %p97
      %p99 = scmp.ne.s32.totalorder %s90, %s91
      %p100 = scmp.eq.s32.totalorder %s17, 0
      %p101 = por %p99, %p100
      %p102 = scmp.ne.s32.totalorder %s90, %s91
      %p103 = scmp.eq.s32.totalorder %s18, 1
      %p104 = por %p102, %p103
      %p106 = scmp.ne.s32.totalorder %s91, %s105
      %p107 = scmp.eq.s32.totalorder %s18, 0
      %p108 = por %p106, %p107
      %s110 = sadd.s32 %s109, 1
      %p113 = scmp.eq.s32.totalorder %s12, 1
      %p114 = scmp.ne.s32.totalorder %s109, %s111
      %p115 = scmp.eq.s32.totalorder %s12, 0
      %p116 = por %p114, %p115
      %p117 = scmp.ne.s32.totalorder %s109, %s111
      %p118 = scmp.eq.s32.totalorder %s17, 1
      %p119 = por %p117, %p118
      %p120 = scmp.ne.s32.totalorder %s111, %s112
      %p121 = scmp.eq.s32.totalorder %s17, 0
      %p122 = por %p120, %p121
      %p123 = scmp.ne.s32.totalorder %s111, %s112
      %p124 = scmp.eq.s32.totalorder %s18, 1
      %p125 = por %p123, %p124
      %p127 = scmp.ne.s32.totalorder %s112, %s126
      %p128 = scmp.eq.s32.totalorder %s18, 0
      %p129 = por %p127, %p128
      %s130 = ssub.s32 %s12, %s19
      %p131 = scmp.eq.s32.totalorder %s130, 0
      %s133 = sadd.s32 %s132, 1
      %s134 = scalar_select %p131, %s132, %s133
      %p137 = pneg %p131
      %p138 = scmp.eq.s32.totalorder %s12, 1
      %p139 = por %p137, %p138
      %p140 = scmp.ne.s32.totalorder %s132, %s135
      %p141 = scmp.eq.s32.totalorder %s12, 0
      %p142 = por %p140, %p141
      %p143 = scmp.ne.s32.totalorder %s132, %s135
      %p144 = scmp.eq.s32.totalorder %s17, 1
      %p145 = por %p143, %p144
      %p146 = scmp.ne.s32.totalorder %s135, %s136
      %p147 = scmp.eq.s32.totalorder %s17, 0
      %p148 = por %p146, %p147
      %p149 = scmp.ne.s32.totalorder %s135, %s136
      %p150 = scmp.eq.s32.totalorder %s18, 1
      %p151 = por %p149, %p150
      %p153 = scmp.ne.s32.totalorder %s136, %s152
      %p154 = scmp.eq.s32.totalorder %s18, 0
      %p155 = por %p153, %p154
      %p156 = scmp.le.s32.totalorder 1, %s12
      %p157 = scmp.lt.s32.totalorder %s12, 3
      %p158 = pnand %p156, %p157
      %p159 = pneg %p158
      // Predicated region
      $region9: #{attention_forward.1} parent=5 // pred_check
        _
      $region10: #{attention_forward.1} parent=5 // pred_check_branch
        %161 = sbr.rel (%p158) target = $region12
      $region11: #{attention_forward.1} parent=5 // pred_region
        %s162 = ssub.s32 %s12, 1
        // Predicated region
        $region13: #{attention_forward.1} parent=11 // pred_check
          %p163 = pneg %p59
        $region14: #{attention_forward.1} parent=11 // pred_check_branch
          %165 = sbr.rel (%p163) target = $region16
        $region15: #{attention_forward.1} parent=11 // pred_region
          %167 = vsyncadd [#allocation3], 0
          %s168 = sshll.u32 %s1, 4
          %s169 = int_to_ptr.hbm [resolvable:$true] %s168
          %s170 = sshll.u32 [#allocation2], 4
          %s171 = int_to_ptr.vmem [resolvable:$true] %s170
          %176 = dma.hbm_to_vmem [thread:$0]  %s169, 4096, %s171, [#allocation3], 256, 256, 16
        $region16: #{attention_forward.1} parent=11 // pred_fallthru
          _
        // Predicated region
        $region17: #{attention_forward.1} parent=11 // pred_check
          %p177 = pneg %p80
        $region18: #{attention_forward.1} parent=11 // pred_check_branch
          %179 = sbr.rel (%p177) target = $region20
        $region19: #{attention_forward.1} parent=11 // pred_region
          _
        $region20: #{attention_forward.1} parent=11 // pred_fallthru
          _
        // Predicated region
        $region21: #{attention_forward.1} parent=11 // pred_check
          %p180 = pneg %p101
        $region22: #{attention_forward.1} parent=11 // pred_check_branch
          %182 = sbr.rel (%p180) target = $region24
        $region23: #{attention_forward.1} parent=11 // pred_region
          _
        $region24: #{attention_forward.1} parent=11 // pred_fallthru
          _
        // Predicated region
        $region25: #{attention_forward.1} parent=11 // pred_check
          %p183 = pneg %p122
        $region26: #{attention_forward.1} parent=11 // pred_check_branch
          %185 = sbr.rel (%p183) target = $region28
        $region27: #{attention_forward.1} parent=11 // pred_region
          _
        $region28: #{attention_forward.1} parent=11 // pred_fallthru
          _
      $region12: #{attention_forward.1} parent=5 // pred_fallthru
        _
      %p186 = scmp.lt.s32.totalorder %s12, 2
      // Predicated region
      $region29: #{attention_forward.1} parent=5 // pred_check
        %p187 = pneg %p186
      $region30: #{attention_forward.1} parent=5 // pred_check_branch
        %189 = sbr.rel (%p187) target = $region32
      $region31: #{attention_forward.1} parent=5 // pred_region
        // Predicated region
        $region33: #{attention_forward.1} parent=31 // pred_check
          %p190 = pneg %p32
        $region34: #{attention_forward.1} parent=31 // pred_check_branch
          %192 = sbr.rel (%p190) target = $region36
        $region35: #{attention_forward.1} parent=31 // pred_region
          %s193 = smul.u32 2, %s12
          %p194 = scmp.lt.s32.totalorder %s193, 3
          %s195 = scalar_select %p194, %s193, 3
          %s196 = smul.addr %s195, 4
          %s197 = scalar_lea.vmem %s0, %s196
          %s198 = smul.u32 2, %s12
        $region36: #{attention_forward.1} parent=31 // pred_fallthru
          _
      $region32: #{attention_forward.1} parent=5 // pred_fallthru
        _
      %p199 = scmp.le.s32.totalorder 1, %s12
      %p200 = scmp.lt.s32.totalorder %s12, 3
      %p201 = pnand %p199, %p200
      %p202 = pneg %p201
      // Predicated region
      $region37: #{attention_forward.1} parent=5 // pred_check
        _
      $region38: #{attention_forward.1} parent=5 // pred_check_branch
        %204 = sbr.rel (%p201) target = $region40
      $region39: #{attention_forward.1} parent=5 // pred_region
        %s205 = ssub.s32 %s12, 1
        // Predicated region
        $region41: #{attention_forward.1} parent=39 // pred_check
          %p206 = pneg %p59
        $region42: #{attention_forward.1} parent=39 // pred_check_branch
          %208 = sbr.rel (%p206) target = $region44
        $region43: #{attention_forward.1} parent=39 // pred_region
          %210 = dma.done [#allocation3], 4096
        $region44: #{attention_forward.1} parent=39 // pred_fallthru
          _
        %s211 = smul.u32 2, %s17
        %p212 = scmp.lt.s32.totalorder %s211, 3
        %s213 = scalar_select %p212, %s211, 3
        %s214 = smul.addr %s213, 4
        %s215 = scalar_lea.vmem %s0, %s214
        %p216 = pneg %p38
        %p217 = pneg %p35
        %p218 = pneg %p59
        %p219 = pneg %p56
        %p220 = pneg %p80
        %p221 = pneg %p77
        %p222 = pneg %p101
        %p223 = pneg %p98
        %p224 = pneg %p122
        %p225 = pneg %p119
        %p226 = pneg %p148
        %p227 = pneg %p145
        %s228 = smul.u32 2, %s17
        %p229 = scmp.lt.s32.totalorder %s228, 3
        %s230 = scalar_select %p229, %s228, 3
        %s231 = smul.addr %s230, 8
        %s232 = scalar_lea.vmem %s5, %s231
        %s233 = smul.u32 2, %s17
        %p234 = scmp.lt.s32.totalorder %s233, 3
        %s235 = scalar_select %p234, %s233, 3
        %s236 = smul.addr %s235, 4
        %s237 = scalar_lea.vmem %s0, %s236
        %s238 = smul.u32 2, %s17
        %s239 = smul.u32 2, %s17
        %p240 = scmp.lt.s32.totalorder %s239, 3
        %s241 = scalar_select %p240, %s239, 3
        %s242 = smul.addr %s241, 8
        %s243 = scalar_lea.vmem %s5, %s242
        %s244 = smul.u32 2, %s17
        %v246 = vld [vmem:[%s237] sm:$0xf]
        %v247 = vld [vmem:[%s237 + $0x4] sm:$0xf]
        %v248 = vld [vmem:[#allocation2] sm:$0xff]
        %v249 = vld [vmem:[#allocation2 + $0x8] sm:$0xff]
        %v250 = vld [vmem:[#allocation2 + $0x10] sm:$0xff]
        %v251 = vld [vmem:[#allocation2 + $0x18] sm:$0xff]
        %v252 = vld [vmem:[#allocation2 + $0x20] sm:$0xff]
        %v253 = vld [vmem:[#allocation2 + $0x28] sm:$0xff]
        %v254 = vld [vmem:[#allocation2 + $0x30] sm:$0xff]
        %v255 = vld [vmem:[#allocation2 + $0x38] sm:$0xff]
        %v256 = vld [vmem:[#allocation2 + $0x40] sm:$0xff]
        %v257 = vld [vmem:[#allocation2 + $0x48] sm:$0xff]
        %v258 = vld [vmem:[#allocation2 + $0x50] sm:$0xff]
        %v259 = vld [vmem:[#allocation2 + $0x58] sm:$0xff]
        %v260 = vld [vmem:[#allocation2 + $0x60] sm:$0xff]
        %v261 = vld [vmem:[#allocation2 + $0x68] sm:$0xff]
        %v262 = vld [vmem:[#allocation2 + $0x70] sm:$0xff]
        %v263 = vld [vmem:[#allocation2 + $0x78] sm:$0xff]
        %v264 = vld [vmem:[#allocation2 + $0x80] sm:$0xff]
        %v265 = vld [vmem:[#allocation2 + $0x88] sm:$0xff]
        %v266 = vld [vmem:[#allocation2 + $0x90] sm:$0xff]
        %v267 = vld [vmem:[#allocation2 + $0x98] sm:$0xff]
        %v268 = vld [vmem:[#allocation2 + $0xa0] sm:$0xff]
        %v269 = vld [vmem:[#allocation2 + $0xa8] sm:$0xff]
        %v270 = vld [vmem:[#allocation2 + $0xb0] sm:$0xff]
        %v271 = vld [vmem:[#allocation2 + $0xb8] sm:$0xff]
        %v272 = vld [vmem:[#allocation2 + $0xc0] sm:$0xff]
        %v273 = vld [vmem:[#allocation2 + $0xc8] sm:$0xff]
        %v274 = vld [vmem:[#allocation2 + $0xd0] sm:$0xff]
        %v275 = vld [vmem:[#allocation2 + $0xd8] sm:$0xff]
        %v276 = vld [vmem:[#allocation2 + $0xe0] sm:$0xff]
        %v277 = vld [vmem:[#allocation2 + $0xe8] sm:$0xff]
        %v278 = vld [vmem:[#allocation2 + $0xf0] sm:$0xff]
        %v279 = vld [vmem:[#allocation2 + $0xf8] sm:$0xff]
        %v280 = vld [vmem:[%s2] sm:$0xf]
        %v282 = vperm.slane %v280, 0
        %v283 = vperm.slane %v280, 1
        %v284 = vperm.slane %v280, 2
        %v285 = vperm.slane %v280, 3
        %v292 = vunpack.c.l.b16 %v246
        %v293 = vunpack.c.l.b16 %v247
        %v294 = vpack.c.b16 %v293, %v292
        %v328 = vunpack.c.l.b16 %v248
        %v329 = vunpack.c.h.b16 %v248
        %v330 = vunpack.c.l.b16 %v249
        %v331 = vunpack.c.h.b16 %v249
        %v332 = vunpack.c.l.b16 %v250
        %v333 = vunpack.c.h.b16 %v250
        %v334 = vunpack.c.l.b16 %v251
        %v335 = vunpack.c.h.b16 %v251
        %v336 = vunpack.c.l.b16 %v252
        %v337 = vunpack.c.h.b16 %v252
        %v338 = vunpack.c.l.b16 %v253
        %v339 = vunpack.c.h.b16 %v253
        %v340 = vunpack.c.l.b16 %v254
        %v341 = vunpack.c.h.b16 %v254
        %v342 = vunpack.c.l.b16 %v255
        %v343 = vunpack.c.h.b16 %v255
        %v344 = vunpack.c.l.b16 %v256
        %v345 = vunpack.c.h.b16 %v256
        %v346 = vunpack.c.l.b16 %v257
        %v347 = vunpack.c.h.b16 %v257
        %v348 = vunpack.c.l.b16 %v258
        %v349 = vunpack.c.h.b16 %v258
        %v350 = vunpack.c.l.b16 %v259
        %v351 = vunpack.c.h.b16 %v259
        %v352 = vunpack.c.l.b16 %v260
        %v353 = vunpack.c.h.b16 %v260
        %v354 = vunpack.c.l.b16 %v261
        %v355 = vunpack.c.h.b16 %v261
        %v356 = vunpack.c.l.b16 %v262
        %v357 = vunpack.c.h.b16 %v262
        %v358 = vunpack.c.l.b16 %v263
        %v359 = vunpack.c.h.b16 %v263
        %v360 = vunpack.c.l.b16 %v264
        %v361 = vunpack.c.h.b16 %v264
        %v362 = vunpack.c.l.b16 %v265
        %v363 = vunpack.c.h.b16 %v265
        %v364 = vunpack.c.l.b16 %v266
        %v365 = vunpack.c.h.b16 %v266
        %v366 = vunpack.c.l.b16 %v267
        %v367 = vunpack.c.h.b16 %v267
        %v368 = vunpack.c.l.b16 %v268
        %v369 = vunpack.c.h.b16 %v268
        %v370 = vunpack.c.l.b16 %v269
        %v371 = vunpack.c.h.b16 %v269
        %v372 = vunpack.c.l.b16 %v270
        %v373 = vunpack.c.h.b16 %v270
        %v374 = vunpack.c.l.b16 %v271
        %v375 = vunpack.c.h.b16 %v271
        %v376 = vunpack.c.l.b16 %v272
        %v377 = vunpack.c.h.b16 %v272
        %v378 = vunpack.c.l.b16 %v273
        %v379 = vunpack.c.h.b16 %v273
        %v380 = vunpack.c.l.b16 %v274
        %v381 = vunpack.c.h.b16 %v274
        %v382 = vunpack.c.l.b16 %v275
        %v383 = vunpack.c.h.b16 %v275
        %v384 = vunpack.c.l.b16 %v276
        %v385 = vunpack.c.h.b16 %v276
        %v386 = vunpack.c.l.b16 %v277
        %v387 = vunpack.c.h.b16 %v277
        %v388 = vunpack.c.l.b16 %v278
        %v389 = vunpack.c.h.b16 %v278
        %v390 = vunpack.c.l.b16 %v279
        %v391 = vunpack.c.h.b16 %v279
        %v392 = vpack.c.b16 %v332, %v328
        %v393 = vpack.c.b16 %v333, %v329
        %v394 = vpack.c.b16 %v334, %v330
        %v395 = vpack.c.b16 %v335, %v331
        %v396 = vpack.c.b16 %v340, %v336
        %v397 = vpack.c.b16 %v341, %v337
        %v398 = vpack.c.b16 %v342, %v338
        %v399 = vpack.c.b16 %v343, %v339
        %v400 = vpack.c.b16 %v348, %v344
        %v401 = vpack.c.b16 %v349, %v345
        %v402 = vpack.c.b16 %v350, %v346
        %v403 = vpack.c.b16 %v351, %v347
        %v404 = vpack.c.b16 %v356, %v352
        %v405 = vpack.c.b16 %v357, %v353
        %v406 = vpack.c.b16 %v358, %v354
        %v407 = vpack.c.b16 %v359, %v355
        %v408 = vpack.c.b16 %v364, %v360
        %v409 = vpack.c.b16 %v365, %v361
        %v410 = vpack.c.b16 %v366, %v362
        %v411 = vpack.c.b16 %v367, %v363
        %v412 = vpack.c.b16 %v372, %v368
        %v413 = vpack.c.b16 %v373, %v369
        %v414 = vpack.c.b16 %v374, %v370
        %v415 = vpack.c.b16 %v375, %v371
        %v416 = vpack.c.b16 %v380, %v376
        %v417 = vpack.c.b16 %v381, %v377
        %v418 = vpack.c.b16 %v382, %v378
        %v419 = vpack.c.b16 %v383, %v379
        %v420 = vpack.c.b16 %v388, %v384
        %v421 = vpack.c.b16 %v389, %v385
        %v422 = vpack.c.b16 %v390, %v386
        %v423 = vpack.c.b16 %v391, %v387
        %456 = vmatpush.bf16.msra.mxu0 %v420
        %457 = vmatpush.bf16.msra.mxu0 %v416
        %458 = vmatpush.bf16.msra.mxu0 %v412
        %459 = vmatpush.bf16.msra.mxu0 %v408
        %460 = vmatpush.bf16.msra.mxu0 %v404
        %461 = vmatpush.bf16.msra.mxu0 %v400
        %462 = vmatpush.bf16.msra.mxu0 %v396
        %463 = vmatpush.bf16.msra.mxu0 %v392
        %464 = vmatmul.bf16.gmra.mxu0 %v294
        %v465 = vpop.f32.mrf.mxu0
        %v466 = vadd.f32 %v282, %v465
        %v467 = vpop.f32.mrf.mxu0
        %v468 = vadd.f32 %v282, %v467
        %469 = vdwg.mxu0
        %470 = vmatpush.bf16.msra.mxu0 %v421
        %471 = vmatpush.bf16.msra.mxu0 %v417
        %472 = vmatpush.bf16.msra.mxu0 %v413
        %473 = vmatpush.bf16.msra.mxu0 %v409
        %474 = vmatpush.bf16.msra.mxu0 %v405
        %475 = vmatpush.bf16.msra.mxu0 %v401
        %476 = vmatpush.bf16.msra.mxu0 %v397
        %477 = vmatpush.bf16.msra.mxu0 %v393
        %478 = vmatmul.bf16.gmra.mxu0 %v294
        %v479 = vpop.f32.mrf.mxu0
        %v480 = vadd.f32 %v283, %v479
        %v481 = vpop.f32.mrf.mxu0
        %v482 = vadd.f32 %v283, %v481
        %483 = vdwg.mxu0
        %484 = vmatpush.bf16.msra.mxu0 %v422
        %485 = vmatpush.bf16.msra.mxu0 %v418
        %486 = vmatpush.bf16.msra.mxu0 %v414
        %487 = vmatpush.bf16.msra.mxu0 %v410
        %488 = vmatpush.bf16.msra.mxu0 %v406
        %489 = vmatpush.bf16.msra.mxu0 %v402
        %490 = vmatpush.bf16.msra.mxu0 %v398
        %491 = vmatpush.bf16.msra.mxu0 %v394
        %492 = vmatmul.bf16.gmra.mxu0 %v294
        %v493 = vpop.f32.mrf.mxu0
        %v494 = vadd.f32 %v284, %v493
        %v495 = vpop.f32.mrf.mxu0
        %v496 = vadd.f32 %v284, %v495
        %497 = vdwg.mxu0
        %498 = vmatpush.bf16.msra.mxu0 %v423
        %499 = vmatpush.bf16.msra.mxu0 %v419
        %500 = vmatpush.bf16.msra.mxu0 %v415
        %501 = vmatpush.bf16.msra.mxu0 %v411
        %502 = vmatpush.bf16.msra.mxu0 %v407
        %503 = vmatpush.bf16.msra.mxu0 %v403
        %504 = vmatpush.bf16.msra.mxu0 %v399
        %505 = vmatpush.bf16.msra.mxu0 %v395
        %506 = vmatmul.bf16.gmra.mxu0 %v294
        %v507 = vpop.f32.mrf.mxu0
        %v508 = vadd.f32 %v285, %v507
        %v509 = vpop.f32.mrf.mxu0
        %v510 = vadd.f32 %v285, %v509
        %511 = vdwg.mxu0
        %v512 = vpack.c.bf16 %v480, %v466
        %v513 = vpack.c.bf16 %v508, %v494
        %v514 = vpack.c.bf16 %v482, %v468
        %v515 = vpack.c.bf16 %v510, %v496
        %v516 = vlaneseq
        %v517 = vand.u32 %v516, 127
        %vm518 = vcmp.lt.s32.totalorder %v517, 9
        %v519 = vld [vmem:[%s3] sm:$0xf]
        %v520 = vld [vmem:[%s3 + $0x4] sm:$0xf]
        %v521 = vld [vmem:[%s3 + $0x8] sm:$0xf]
        %v522 = vld [vmem:[%s3 + $0xc] sm:$0xf]
        %v523 = vld [vmem:[%s3 + $0x10] sm:$0xf]
        %v524 = vld [vmem:[%s3 + $0x14] sm:$0xf]
        %v525 = vld [vmem:[%s3 + $0x18] sm:$0xf]
        %v526 = vld [vmem:[%s3 + $0x1c] sm:$0xf]
        %v527 = vld [vmem:[%s3 + $0x20] sm:$0xf]
        %v528 = vld [vmem:[%s3 + $0x24] sm:$0xf]
        %v529 = vld [vmem:[%s3 + $0x28] sm:$0xf]
        %v530 = vld [vmem:[%s3 + $0x2c] sm:$0xf]
        %v531 = vld [vmem:[%s3 + $0x30] sm:$0xf]
        %v532 = vld [vmem:[%s3 + $0x34] sm:$0xf]
        %v533 = vld [vmem:[%s3 + $0x38] sm:$0xf]
        %v534 = vld [vmem:[%s3 + $0x3c] sm:$0xf]
        %v535 = vld [vmem:[%s4] sm:$0x1]
        %v538 = vunpack.c.l.b16 %v512
        %v539 = vunpack.c.l.b16 %v514
        %v540 = vpack.c.b16 %v539, %v538
        %541 = vrot.lane.b32.xlu0 %v540, 96
        %v542 = vpop.permute.xlu0 %541
        %vm543 = vcmask 261120
        %v545 = vsel %vm543, %v540, 0
        %v548 = vsel %vm543, %v542, 0
        %550 = vmatpush.bf16.xpose.msra.mxu0 0
        %551 = vmatpush.bf16.xpose.msra.mxu0 0
        %552 = vmatpush.bf16.xpose.msra.mxu0 0
        %553 = vmatpush.bf16.xpose.msra.mxu0 0
        %554 = vmatpush.bf16.xpose.msra.mxu0 0
        %555 = vmatpush.bf16.xpose.msra.mxu0 0
        %556 = vmatpush.bf16.xpose.msra.mxu0 0
        %557 = vmatpush.bf16.xpose.msra.mxu0 %v548
        %558 = vmatmul.bf16.gmra.mxu0 %v545
        %v559 = vpop.f32.mrf.mxu0
        %v560 = vadd.f32 0.0, %v559
        %v561 = vpop.f32.mrf.mxu0
        %v562 = vadd.f32 0.0, %v561
        %563 = vdwg.mxu0
        %564 = vrot.lane.b32.xlu0 %v540, 64
        %v565 = vpop.permute.xlu0 %564
        %v567 = vsel %vm543, %v565, 0
        %569 = vmatpush.bf16.xpose.msra.mxu0 0
        %570 = vmatpush.bf16.xpose.msra.mxu0 0
        %571 = vmatpush.bf16.xpose.msra.mxu0 0
        %572 = vmatpush.bf16.xpose.msra.mxu0 0
        %573 = vmatpush.bf16.xpose.msra.mxu0 0
        %574 = vmatpush.bf16.xpose.msra.mxu0 0
        %575 = vmatpush.bf16.xpose.msra.mxu0 0
        %576 = vmatpush.bf16.xpose.msra.mxu0 %v567
        %577 = vmatmul.bf16.gmra.mxu0 %v545
        %v578 = vpop.f32.mrf.mxu0
        %v579 = vadd.f32 0.0, %v578
        %v580 = vpop.f32.mrf.mxu0
        %v581 = vadd.f32 0.0, %v580
        %582 = vdwg.mxu0
        %v583 = vmul.f32 %v560, %v560
        %v584 = vmul.f32 %v562, %v562
        %v585 = vmul.f32 %v579, %v579
        %v586 = vmul.f32 %v581, %v581
        %v587 = vadd.f32 %v583, %v585
        %v588 = vadd.f32 %v584, %v586
        %vm589 = vcmp.gt.f32.partialorder %v587, 0.0
        %vm590 = vcmp.gt.f32.partialorder %v588, 0.0
        %v591 = vsel %vm589, %v587, 1.0
        %v592 = vsel %vm590, %v588, 1.0
        %v593 = vrsqrt.pop %v591
        %v594 = vmul.f32 %v593, %v591
        %v595 = vmul.f32 %v594, %v593
        %v596 = vmul.f32 0.5, %v595
        %v597 = vsub.f32 1.5, %v596
        %v598 = vmul.f32 %v593, %v597
        %vm599 = vweird.f32 %v591
        %vm600 = vweird.f32 %v593
        %vm601 = vmor %vm599, %vm600
        %v602 = vsel %vm601, %v593, %v598
        %v603 = vrsqrt.pop %v592
        %v604 = vmul.f32 %v603, %v592
        %v605 = vmul.f32 %v604, %v603
        %v606 = vmul.f32 0.5, %v605
        %v607 = vsub.f32 1.5, %v606
        %v608 = vmul.f32 %v603, %v607
        %vm609 = vweird.f32 %v592
        %vm610 = vweird.f32 %v603
        %vm611 = vmor %vm609, %vm610
        %v612 = vsel %vm611, %v603, %v608
        %v613 = vmul.f32 %v560, %v602
        %v614 = vmul.f32 %v562, %v612
        %v615 = vsel %vm589, %v613, 1.0
        %v616 = vsel %vm590, %v614, 1.0
        %v617 = vmul.f32 %v615, 10.0
        %v618 = vmul.f32 %v616, 10.0
        %v619 = vmul.f32 %v617, 1.442695
        %v620 = vpow.pop %v619
        %v621 = vmul.f32 %v618, 1.442695
        %v622 = vpow.pop %v621
        %v623 = vsel %vm518, %v620, 0.0
        %v624 = vsel %vm518, %v622, 0.0
        %vm625 = vcmask 130048
        %v626 = vsel %vm625, %v623, 0.0
        %627 = vadd.xlane.f32.xlu0 %v626
        %v628 = vpop.xlane.xlu0 %627
        %v629 = vsel %vm625, %v624, 0.0
        %630 = vadd.xlane.f32.xlu0 %v629
        %v631 = vpop.xlane.xlu0 %630
        %v632 = vrcp.pop %v628
        %v633 = vrcp.pop %v631
        %v634 = vmul.f32 %v623, %v632
        %v635 = vmul.f32 %v624, %v633
        %v636 = vpack.c.bf16 %v635, %v634
        %637 = vrot.lane.b32.xlu0 %v540, 32
        %v638 = vpop.permute.xlu0 %637
        %v641 = vsel %vm625, %v636, 0
        %643 = vmatpush.bf16.msra.mxu0 0
        %644 = vmatpush.bf16.msra.mxu0 0
        %645 = vmatpush.bf16.msra.mxu0 0
        %646 = vmatpush.bf16.msra.mxu0 0
        %647 = vmatpush.bf16.msra.mxu0 0
        %648 = vmatpush.bf16.msra.mxu0 0
        %649 = vmatpush.bf16.msra.mxu0 0
        %650 = vmatpush.bf16.msra.mxu0 %v638
        %651 = vmatmul.bf16.gmra.mxu0 %v641
        %v652 = vpop.f32.mrf.mxu0
        %v653 = vadd.f32 0.0, %v652
        %v654 = vpop.f32.mrf.mxu0
        %v655 = vadd.f32 0.0, %v654
        %656 = vdwg.mxu0
        %v657 = vunpack.c.h.b16 %v512
        %v658 = vunpack.c.h.b16 %v514
        %v659 = vpack.c.b16 %v658, %v657
        %660 = vrot.lane.b32.xlu0 %v659, 96
        %v661 = vpop.permute.xlu0 %660
        %v663 = vsel %vm543, %v659, 0
        %v666 = vsel %vm543, %v661, 0
        %668 = vmatpush.bf16.xpose.msra.mxu0 0
        %669 = vmatpush.bf16.xpose.msra.mxu0 0
        %670 = vmatpush.bf16.xpose.msra.mxu0 0
        %671 = vmatpush.bf16.xpose.msra.mxu0 0
        %672 = vmatpush.bf16.xpose.msra.mxu0 0
        %673 = vmatpush.bf16.xpose.msra.mxu0 0
        %674 = vmatpush.bf16.xpose.msra.mxu0 0
        %675 = vmatpush.bf16.xpose.msra.mxu0 %v666
        %676 = vmatmul.bf16.gmra.mxu0 %v663
        %v677 = vpop.f32.mrf.mxu0
        %v678 = vadd.f32 0.0, %v677
        %v679 = vpop.f32.mrf.mxu0
        %v680 = vadd.f32 0.0, %v679
        %681 = vdwg.mxu0
        %682 = vrot.lane.b32.xlu0 %v659, 64
        %v683 = vpop.permute.xlu0 %682
        %v685 = vsel %vm543, %v683, 0
        %687 = vmatpush.bf16.xpose.msra.mxu0 0
        %688 = vmatpush.bf16.xpose.msra.mxu0 0
        %689 = vmatpush.bf16.xpose.msra.mxu0 0
        %690 = vmatpush.bf16.xpose.msra.mxu0 0
        %691 = vmatpush.bf16.xpose.msra.mxu0 0
        %692 = vmatpush.bf16.xpose.msra.mxu0 0
        %693 = vmatpush.bf16.xpose.msra.mxu0 0
        %694 = vmatpush.bf16.xpose.msra.mxu0 %v685
        %695 = vmatmul.bf16.gmra.mxu0 %v663
        %v696 = vpop.f32.mrf.mxu0
        %v697 = vadd.f32 0.0, %v696
        %v698 = vpop.f32.mrf.mxu0
        %v699 = vadd.f32 0.0, %v698
        %700 = vdwg.mxu0
        %v701 = vmul.f32 %v678, %v678
        %v702 = vmul.f32 %v680, %v680
        %v703 = vmul.f32 %v697, %v697
        %v704 = vmul.f32 %v699, %v699
        %v705 = vadd.f32 %v701, %v703
        %v706 = vadd.f32 %v702, %v704
        %vm707 = vcmp.gt.f32.partialorder %v705, 0.0
        %vm708 = vcmp.gt.f32.partialorder %v706, 0.0
        %v709 = vsel %vm707, %v705, 1.0
        %v710 = vsel %vm708, %v706, 1.0
        %v711 = vrsqrt.pop %v709
        %v712 = vmul.f32 %v711, %v709
        %v713 = vmul.f32 %v712, %v711
        %v714 = vmul.f32 0.5, %v713
        %v715 = vsub.f32 1.5, %v714
        %v716 = vmul.f32 %v711, %v715
        %vm717 = vweird.f32 %v709
        %vm718 = vweird.f32 %v711
        %vm719 = vmor %vm717, %vm718
        %v720 = vsel %vm719, %v711, %v716
        %v721 = vrsqrt.pop %v710
        %v722 = vmul.f32 %v721, %v710
        %v723 = vmul.f32 %v722, %v721
        %v724 = vmul.f32 0.5, %v723
        %v725 = vsub.f32 1.5, %v724
        %v726 = vmul.f32 %v721, %v725
        %vm727 = vweird.f32 %v710
        %vm728 = vweird.f32 %v721
        %vm729 = vmor %vm727, %vm728
        %v730 = vsel %vm729, %v721, %v726
        %v731 = vmul.f32 %v678, %v720
        %v732 = vmul.f32 %v680, %v730
        %v733 = vsel %vm707, %v731, 1.0
        %v734 = vsel %vm708, %v732, 1.0
        %v735 = vmul.f32 %v733, 10.0
        %v736 = vmul.f32 %v734, 10.0
        %v737 = vmul.f32 %v735, 1.442695
        %v738 = vpow.pop %v737
        %v739 = vmul.f32 %v736, 1.442695
        %v740 = vpow.pop %v739
        %v741 = vsel %vm518, %v738, 0.0
        %v742 = vsel %vm518, %v740, 0.0
        %v743 = vsel %vm625, %v741, 0.0
        %744 = vadd.xlane.f32.xlu0 %v743
        %v745 = vpop.xlane.xlu0 %744
        %v746 = vsel %vm625, %v742, 0.0
        %747 = vadd.xlane.f32.xlu0 %v746
        %v748 = vpop.xlane.xlu0 %747
        %v749 = vrcp.pop %v745
        %v750 = vrcp.pop %v748
        %v751 = vmul.f32 %v741, %v749
        %v752 = vmul.f32 %v742, %v750
        %v753 = vpack.c.bf16 %v752, %v751
        %754 = vrot.lane.b32.xlu0 %v659, 32
        %v755 = vpop.permute.xlu0 %754
        %v758 = vsel %vm625, %v753, 0
        %760 = vmatpush.bf16.msra.mxu0 0
        %761 = vmatpush.bf16.msra.mxu0 0
        %762 = vmatpush.bf16.msra.mxu0 0
        %763 = vmatpush.bf16.msra.mxu0 0
        %764 = vmatpush.bf16.msra.mxu0 0
        %765 = vmatpush.bf16.msra.mxu0 0
        %766 = vmatpush.bf16.msra.mxu0 0
        %767 = vmatpush.bf16.msra.mxu0 %v755
        %768 = vmatmul.bf16.gmra.mxu0 %v758
        %v769 = vpop.f32.mrf.mxu0
        %v770 = vadd.f32 0.0, %v769
        %v771 = vpop.f32.mrf.mxu0
        %v772 = vadd.f32 0.0, %v771
        %773 = vdwg.mxu0
        %v776 = vunpack.c.l.b16 %v513
        %v777 = vunpack.c.l.b16 %v515
        %v778 = vpack.c.b16 %v777, %v776
        %779 = vrot.lane.b32.xlu0 %v778, 96
        %v780 = vpop.permute.xlu0 %779
        %v782 = vsel %vm543, %v778, 0
        %v785 = vsel %vm543, %v780, 0
        %787 = vmatpush.bf16.xpose.msra.mxu0 0
        %788 = vmatpush.bf16.xpose.msra.mxu0 0
        %789 = vmatpush.bf16.xpose.msra.mxu0 0
        %790 = vmatpush.bf16.xpose.msra.mxu0 0
        %791 = vmatpush.bf16.xpose.msra.mxu0 0
        %792 = vmatpush.bf16.xpose.msra.mxu0 0
        %793 = vmatpush.bf16.xpose.msra.mxu0 0
        %794 = vmatpush.bf16.xpose.msra.mxu0 %v785
        %795 = vmatmul.bf16.gmra.mxu0 %v782
        %v796 = vpop.f32.mrf.mxu0
        %v797 = vadd.f32 0.0, %v796
        %v798 = vpop.f32.mrf.mxu0
        %v799 = vadd.f32 0.0, %v798
        %800 = vdwg.mxu0
        %801 = vrot.lane.b32.xlu0 %v778, 64
        %v802 = vpop.permute.xlu0 %801
        %v804 = vsel %vm543, %v802, 0
        %806 = vmatpush.bf16.xpose.msra.mxu0 0
        %807 = vmatpush.bf16.xpose.msra.mxu0 0
        %808 = vmatpush.bf16.xpose.msra.mxu0 0
        %809 = vmatpush.bf16.xpose.msra.mxu0 0
        %810 = vmatpush.bf16.xpose.msra.mxu0 0
        %811 = vmatpush.bf16.xpose.msra.mxu0 0
        %812 = vmatpush.bf16.xpose.msra.mxu0 0
        %813 = vmatpush.bf16.xpose.msra.mxu0 %v804
        %814 = vmatmul.bf16.gmra.mxu0 %v782
        %v815 = vpop.f32.mrf.mxu0
        %v816 = vadd.f32 0.0, %v815
        %v817 = vpop.f32.mrf.mxu0
        %v818 = vadd.f32 0.0, %v817
        %819 = vdwg.mxu0
        %v820 = vmul.f32 %v797, %v797
        %v821 = vmul.f32 %v799, %v799
        %v822 = vmul.f32 %v816, %v816
        %v823 = vmul.f32 %v818, %v818
        %v824 = vadd.f32 %v820, %v822
        %v825 = vadd.f32 %v821, %v823
        %vm826 = vcmp.gt.f32.partialorder %v824, 0.0
        %vm827 = vcmp.gt.f32.partialorder %v825, 0.0
        %v828 = vsel %vm826, %v824, 1.0
        %v829 = vsel %vm827, %v825, 1.0
        %v830 = vrsqrt.pop %v828
        %v831 = vmul.f32 %v830, %v828
        %v832 = vmul.f32 %v831, %v830
        %v833 = vmul.f32 0.5, %v832
        %v834 = vsub.f32 1.5, %v833
        %v835 = vmul.f32 %v830, %v834
        %vm836 = vweird.f32 %v828
        %vm837 = vweird.f32 %v830
        %vm838 = vmor %vm836, %vm837
        %v839 = vsel %vm838, %v830, %v835
        %v840 = vrsqrt.pop %v829
        %v841 = vmul.f32 %v840, %v829
        %v842 = vmul.f32 %v841, %v840
        %v843 = vmul.f32 0.5, %v842
        %v844 = vsub.f32 1.5, %v843
        %v845 = vmul.f32 %v840, %v844
        %vm846 = vweird.f32 %v829
        %vm847 = vweird.f32 %v840
        %vm848 = vmor %vm846, %vm847
        %v849 = vsel %vm848, %v840, %v845
        %v850 = vmul.f32 %v797, %v839
        %v851 = vmul.f32 %v799, %v849
        %v852 = vsel %vm826, %v850, 1.0
        %v853 = vsel %vm827, %v851, 1.0
        %v854 = vmul.f32 %v852, 10.0
        %v855 = vmul.f32 %v853, 10.0
        %v856 = vmul.f32 %v854, 1.442695
        %v857 = vpow.pop %v856
        %v858 = vmul.f32 %v855, 1.442695
        %v859 = vpow.pop %v858
        %v860 = vsel %vm518, %v857, 0.0
        %v861 = vsel %vm518, %v859, 0.0
        %v862 = vsel %vm625, %v860, 0.0
        %863 = vadd.xlane.f32.xlu0 %v862
        %v864 = vpop.xlane.xlu0 %863
        %v865 = vsel %vm625, %v861, 0.0
        %866 = vadd.xlane.f32.xlu0 %v865
        %v867 = vpop.xlane.xlu0 %866
        %v868 = vrcp.pop %v864
        %v869 = vrcp.pop %v867
        %v870 = vmul.f32 %v860, %v868
        %v871 = vmul.f32 %v861, %v869
        %v872 = vpack.c.bf16 %v871, %v870
        %873 = vrot.lane.b32.xlu0 %v778, 32
        %v874 = vpop.permute.xlu0 %873
        %v877 = vsel %vm625, %v872, 0
        %879 = vmatpush.bf16.msra.mxu0 0
        %880 = vmatpush.bf16.msra.mxu0 0
        %881 = vmatpush.bf16.msra.mxu0 0
        %882 = vmatpush.bf16.msra.mxu0 0
        %883 = vmatpush.bf16.msra.mxu0 0
        %884 = vmatpush.bf16.msra.mxu0 0
        %885 = vmatpush.bf16.msra.mxu0 0
        %886 = vmatpush.bf16.msra.mxu0 %v874
        %887 = vmatmul.bf16.gmra.mxu0 %v877
        %v888 = vpop.f32.mrf.mxu0
        %v889 = vadd.f32 0.0, %v888
        %v890 = vpop.f32.mrf.mxu0
        %v891 = vadd.f32 0.0, %v890
        %892 = vdwg.mxu0
        %v893 = vunpack.c.h.b16 %v513
        %v894 = vunpack.c.h.b16 %v515
        %v895 = vpack.c.b16 %v894, %v893
        %896 = vrot.lane.b32.xlu0 %v895, 96
        %v897 = vpop.permute.xlu0 %896
        %v899 = vsel %vm543, %v895, 0
        %v902 = vsel %vm543, %v897, 0
        %904 = vmatpush.bf16.xpose.msra.mxu0 0
        %905 = vmatpush.bf16.xpose.msra.mxu0 0
        %906 = vmatpush.bf16.xpose.msra.mxu0 0
        %907 = vmatpush.bf16.xpose.msra.mxu0 0
        %908 = vmatpush.bf16.xpose.msra.mxu0 0
        %909 = vmatpush.bf16.xpose.msra.mxu0 0
        %910 = vmatpush.bf16.xpose.msra.mxu0 0
        %911 = vmatpush.bf16.xpose.msra.mxu0 %v902
        %912 = vmatmul.bf16.gmra.mxu0 %v899
        %v913 = vpop.f32.mrf.mxu0
        %v914 = vadd.f32 0.0, %v913
        %v915 = vpop.f32.mrf.mxu0
        %v916 = vadd.f32 0.0, %v915
        %917 = vdwg.mxu0
        %918 = vrot.lane.b32.xlu0 %v895, 64
        %v919 = vpop.permute.xlu0 %918
        %v921 = vsel %vm543, %v919, 0
        %923 = vmatpush.bf16.xpose.msra.mxu0 0
        %924 = vmatpush.bf16.xpose.msra.mxu0 0
        %925 = vmatpush.bf16.xpose.msra.mxu0 0
        %926 = vmatpush.bf16.xpose.msra.mxu0 0
        %927 = vmatpush.bf16.xpose.msra.mxu0 0
        %928 = vmatpush.bf16.xpose.msra.mxu0 0
        %929 = vmatpush.bf16.xpose.msra.mxu0 0
        %930 = vmatpush.bf16.xpose.msra.mxu0 %v921
        %931 = vmatmul.bf16.gmra.mxu0 %v899
        %v932 = vpop.f32.mrf.mxu0
        %v933 = vadd.f32 0.0, %v932
        %v934 = vpop.f32.mrf.mxu0
        %v935 = vadd.f32 0.0, %v934
        %936 = vdwg.mxu0
        %v937 = vmul.f32 %v914, %v914
        %v938 = vmul.f32 %v916, %v916
        %v939 = vmul.f32 %v933, %v933
        %v940 = vmul.f32 %v935, %v935
        %v941 = vadd.f32 %v937, %v939
        %v942 = vadd.f32 %v938, %v940
        %vm943 = vcmp.gt.f32.partialorder %v941, 0.0
        %vm944 = vcmp.gt.f32.partialorder %v942, 0.0
        %v945 = vsel %vm943, %v941, 1.0
        %v946 = vsel %vm944, %v942, 1.0
        %v947 = vrsqrt.pop %v945
        %v948 = vmul.f32 %v947, %v945
        %v949 = vmul.f32 %v948, %v947
        %v950 = vmul.f32 0.5, %v949
        %v951 = vsub.f32 1.5, %v950
        %v952 = vmul.f32 %v947, %v951
        %vm953 = vweird.f32 %v945
        %vm954 = vweird.f32 %v947
        %vm955 = vmor %vm953, %vm954
        %v956 = vsel %vm955, %v947, %v952
        %v957 = vrsqrt.pop %v946
        %v958 = vmul.f32 %v957, %v946
        %v959 = vmul.f32 %v958, %v957
        %v960 = vmul.f32 0.5, %v959
        %v961 = vsub.f32 1.5, %v960
        %v962 = vmul.f32 %v957, %v961
        %vm963 = vweird.f32 %v946
        %vm964 = vweird.f32 %v957
        %vm965 = vmor %vm963, %vm964
        %v966 = vsel %vm965, %v957, %v962
        %v967 = vmul.f32 %v914, %v956
        %v968 = vmul.f32 %v916, %v966
        %v969 = vsel %vm943, %v967, 1.0
        %v970 = vsel %vm944, %v968, 1.0
        %v971 = vmul.f32 %v969, 10.0
        %v972 = vmul.f32 %v970, 10.0
        %v973 = vmul.f32 %v971, 1.442695
        %v974 = vpow.pop %v973
        %v975 = vmul.f32 %v972, 1.442695
        %v976 = vpow.pop %v975
        %v977 = vsel %vm518, %v974, 0.0
        %v978 = vsel %vm518, %v976, 0.0
        %v979 = vsel %vm625, %v977, 0.0
        %980 = vadd.xlane.f32.xlu0 %v979
        %v981 = vpop.xlane.xlu0 %980
        %v982 = vsel %vm625, %v978, 0.0
        %983 = vadd.xlane.f32.xlu0 %v982
        %v984 = vpop.xlane.xlu0 %983
        %v985 = vrcp.pop %v981
        %v986 = vrcp.pop %v984
        %v987 = vmul.f32 %v977, %v985
        %v988 = vmul.f32 %v978, %v986
        %v989 = vpack.c.bf16 %v988, %v987
        %990 = vrot.lane.b32.xlu0 %v895, 32
        %v991 = vpop.permute.xlu0 %990
        %v994 = vsel %vm625, %v989, 0
        %996 = vmatpush.bf16.msra.mxu0 0
        %997 = vmatpush.bf16.msra.mxu0 0
        %998 = vmatpush.bf16.msra.mxu0 0
        %999 = vmatpush.bf16.msra.mxu0 0
        %1000 = vmatpush.bf16.msra.mxu0 0
        %1001 = vmatpush.bf16.msra.mxu0 0
        %1002 = vmatpush.bf16.msra.mxu0 0
        %1003 = vmatpush.bf16.msra.mxu0 %v991
        %1004 = vmatmul.bf16.gmra.mxu0 %v994
        %v1005 = vpop.f32.mrf.mxu0
        %v1006 = vadd.f32 0.0, %v1005
        %v1007 = vpop.f32.mrf.mxu0
        %v1008 = vadd.f32 0.0, %v1007
        %1009 = vdwg.mxu0
        %1012 = vrot.lane.b32.xlu0 %v770, 32
        %v1013 = vpop.permute.xlu0 %1012
        %1014 = vrot.lane.b32.xlu0 %v772, 32
        %v1015 = vpop.permute.xlu0 %1014
        %1020 = vrot.lane.b32.xlu0 %v889, 64
        %v1021 = vpop.permute.xlu0 %1020
        %1022 = vrot.lane.b32.xlu0 %v891, 64
        %v1023 = vpop.permute.xlu0 %1022
        %1028 = vrot.lane.b32.xlu0 %v1006, 96
        %v1029 = vpop.permute.xlu0 %1028
        %1030 = vrot.lane.b32.xlu0 %v1008, 96
        %v1031 = vpop.permute.xlu0 %1030
        %v1034 = vsel %vm543, %v653, %v1013
        %v1035 = vsel %vm543, %v655, %v1015
        %vm1036 = vcmask 523264
        %v1037 = vsel %vm1036, %v1034, %v1021
        %v1038 = vsel %vm1036, %v1035, %v1023
        %vm1039 = vcmask 785408
        %v1040 = vsel %vm1039, %v1037, %v1029
        %v1041 = vsel %vm1039, %v1038, %v1031
        %v1042 = vpack.c.bf16 %v1041, %v1040
        %v1044 = vperm.slane %v535, 0
        %v1062 = vunpack.c.l.b16 %v519
        %v1063 = vunpack.c.l.b16 %v520
        %v1064 = vunpack.c.l.b16 %v521
        %v1065 = vunpack.c.l.b16 %v522
        %v1066 = vunpack.c.l.b16 %v523
        %v1067 = vunpack.c.l.b16 %v524
        %v1068 = vunpack.c.l.b16 %v525
        %v1069 = vunpack.c.l.b16 %v526
        %v1070 = vunpack.c.l.b16 %v527
        %v1071 = vunpack.c.l.b16 %v528
        %v1072 = vunpack.c.l.b16 %v529
        %v1073 = vunpack.c.l.b16 %v530
        %v1074 = vunpack.c.l.b16 %v531
        %v1075 = vunpack.c.l.b16 %v532
        %v1076 = vunpack.c.l.b16 %v533
        %v1077 = vunpack.c.l.b16 %v534
        %v1078 = vpack.c.b16 %v1063, %v1062
        %v1079 = vpack.c.b16 %v1065, %v1064
        %v1080 = vpack.c.b16 %v1067, %v1066
        %v1081 = vpack.c.b16 %v1069, %v1068
        %v1082 = vpack.c.b16 %v1071, %v1070
        %v1083 = vpack.c.b16 %v1073, %v1072
        %v1084 = vpack.c.b16 %v1075, %v1074
        %v1085 = vpack.c.b16 %v1077, %v1076
        %1094 = vmatpush.bf16.msra.mxu0 %v1085
        %1095 = vmatpush.bf16.msra.mxu0 %v1084
        %1096 = vmatpush.bf16.msra.mxu0 %v1083
        %1097 = vmatpush.bf16.msra.mxu0 %v1082
        %1098 = vmatpush.bf16.msra.mxu0 %v1081
        %1099 = vmatpush.bf16.msra.mxu0 %v1080
        %1100 = vmatpush.bf16.msra.mxu0 %v1079
        %1101 = vmatpush.bf16.msra.mxu0 %v1078
        %1102 = vmatmul.bf16.gmra.mxu0 %v1042
        %v1103 = vpop.f32.mrf.mxu0
        %v1104 = vadd.f32 %v1044, %v1103
        %v1105 = vpop.f32.mrf.mxu0
        %v1106 = vadd.f32 %v1044, %v1105
        %1107 = vdwg.mxu0
        %1108 = vst [vmem:[%s243] sm:$0xff] %v1104
        %1109 = vst [vmem:[%s243 + $0x8] sm:$0xff] %v1106
        %s1110 = smul.u32 2, %s17
        %p1111 = scmp.lt.s32.totalorder %s1110, 3
        %s1112 = scalar_select %p1111, %s1110, 3
        %s1113 = smul.addr %s1112, 8
        %s1114 = scalar_lea.vmem %s5, %s1113
        // Predicated region
        $region45: #{attention_forward.1} parent=39 // pred_check
          %p1115 = pneg %p145
        $region46: #{attention_forward.1} parent=39 // pred_check_branch
          %1117 = sbr.rel (%p1115) target = $region48
        $region47: #{attention_forward.1} parent=39 // pred_region
          %s1118 = smul.u32 2, %s17
        $region48: #{attention_forward.1} parent=39 // pred_fallthru
          _
      $region40: #{attention_forward.1} parent=5 // pred_fallthru
        _
      %p1119 = scmp.le.s32.totalorder 2, %s12
      // Predicated region
      $region49: #{attention_forward.1} parent=5 // pred_check
        %p1120 = pneg %p1119
      $region50: #{attention_forward.1} parent=5 // pred_check_branch
        %1122 = sbr.rel (%p1120) target = $region52
      $region51: #{attention_forward.1} parent=5 // pred_region
        %s1123 = ssub.s32 %s12, 2
        // Predicated region
        $region53: #{attention_forward.1} parent=51 // pred_check
          %p1124 = pneg %p151
        $region54: #{attention_forward.1} parent=51 // pred_check_branch
          %1126 = sbr.rel (%p1124) target = $region56
        $region55: #{attention_forward.1} parent=51 // pred_region
          %s1127 = smul.u32 2, %s18
          %p1128 = scmp.lt.s32.totalorder %s1127, 3
          %s1129 = scalar_select %p1128, %s1127, 3
          %s1130 = smul.addr %s1129, 8
          %s1131 = scalar_lea.vmem %s5, %s1130
        $region56: #{attention_forward.1} parent=51 // pred_fallthru
          _
      $region52: #{attention_forward.1} parent=5 // pred_fallthru
        _
    $region6: #{attention_forward.1} parent=1 // loop_footer
      %s16 = sadd.s32 1, %s12
    $region7: #{attention_forward.1} parent=1 // loop_footer_branch
      %11 = sbr.rel target = $region3
    $region8: #{attention_forward.1} parent=1 // loop_exit
      _
    %1132 = vsyncpa [#allocation3], 1
    %s1133 = scalar_lea.sflag [#allocation3], 1
    %1134 = vsyncpa %s1133, 1

</llo_original>
